<compile_context>
chip_gen: v7x
topology: tpu7x:2x2x1
jax: 0.10.0
libtpu: 0.0.40
codegen_flags: <defaults>
</compile_context>

<pallas_src>
import jax
import jax.numpy as jnp
from jax.experimental import pallas as pl
from jax.experimental.pallas import tpu as pltpu


def _w2v_to_pixel_kernel(x_ref, w_ref, b_ref, o_ref):
    # x_ref: (TB, T*D) compute dtype; w_ref: (T*D, 3) compute dtype;
    # b_ref: (1, 3) f32; o_ref: (TB, 3) f32.
    # The 1/T token mean is folded into w_ref, so the forward is a single MXU
    # matmul with f32 accumulation plus a broadcast bias add (f32 on purpose —
    # v5e's VPU has no bf16 path).
    o_ref[...] = (
        jnp.dot(x_ref[...], w_ref[...], preferred_element_type=jnp.float32)
        + b_ref[...]
    )


def word2vec_to_pixel(x, weight, bias, *, block_b=512, compute_dtype=jnp.bfloat16):
    """x: (B, T, D) f32; weight: (3, D) f32 (torch nn.Linear layout); bias: (3,) f32.

    Returns (B, 3) f32 = Linear(mean(x, axis=1)) @ the module's semantics.
    """
    B, T, D = x.shape
    K = T * D

    # Layout prep (plain JAX, fused under jit):
    #   * tokens flattened into the lane axis -> lane-dense (B, T*D) x stream
    #     (last dim 2400 pads to 2432 lanes, ~1.3% waste vs ~28% for D=300)
    #   * 1/T mean folded into the tiled weight -> one MXU contraction
    #   * matmul operands cast to `compute_dtype` (bf16 default halves the
    #     dominant HBM DMA); accumulation stays f32 inside the kernel.
    x2 = x.reshape(B, K).astype(compute_dtype)
    w_eff = (jnp.tile(weight.T, (T, 1)) / T).astype(compute_dtype)
    b2 = bias.reshape(1, 3).astype(jnp.float32)

    # Batch tile: 512 rows x 2432 padded lanes x 2 B (bf16) ~= 2.4 MiB/buffer,
    # ~5 MiB double-buffered (+ ~0.6 MiB W_eff, ~0.25 MiB out) -> fits v5e's
    # 16 MiB default scoped VMEM and v7x's 64 MiB physical VMEM with headroom.
    tb = min(block_b, B)
    grid = (pl.cdiv(B, tb),)

    # NOTE: no jnp.pad of x2.  If B % tb != 0, the ragged last block reads
    # out-of-bounds garbage rows; Pallas clips the matching output write, so
    # rows < B stay exact and no extra HBM copy of x is materialized.  Do not
    # reduce across batch rows inside the kernel.

    itemsize = jnp.dtype(compute_dtype).itemsize
    cost = pl.CostEstimate(
        flops=2 * B * K * 3,
        transcendentals=0,
        bytes_accessed=B * K * itemsize + K * 3 * itemsize + B * 3 * 4 + 3 * 4,
    )

    out = pl.pallas_call(
        _w2v_to_pixel_kernel,
        out_shape=jax.ShapeDtypeStruct((B, 3), jnp.float32),
        grid=grid,
        in_specs=[
            pl.BlockSpec((tb, K), lambda i: (i, 0)),   # x tile: streams over B
            pl.BlockSpec((K, 3), lambda i: (0, 0)),    # W_eff: resident
            pl.BlockSpec((1, 3), lambda i: (0, 0)),    # bias: resident
        ],
        out_specs=pl.BlockSpec((tb, 3), lambda i: (i, 0)),
        compiler_params=pltpu.CompilerParams(
            dimension_semantics=("parallel",)),
        cost_estimate=cost,
    )(x2, w_eff, b2)

    return out


if __name__ == "__main__":
    key = jax.random.PRNGKey(0)
    k_x, k_w, k_b, k_x2 = jax.random.split(key, 4)

    B, T, D = 2, 8, 300  # batch=2, max_tokens=8, word2vec dim=300 (module default)

    x = jax.random.normal(k_x, (B, T, D), dtype=jnp.float32)
    # Deterministic parameter init (nn.Linear(300, 3) -> weight (3, 300), bias (3,))
    bound = 1.0 / jnp.sqrt(D)
    weight = jax.random.uniform(k_w, (3, D), minval=-bound, maxval=bound,
                                dtype=jnp.float32)
    bias = jax.random.uniform(k_b, (3,), minval=-bound, maxval=bound,
                              dtype=jnp.float32)

    fwd = jax.jit(word2vec_to_pixel, static_argnames=("block_b", "compute_dtype"))

    # Case 1: f32 compute path — bit-faithful to the PyTorch module numerics.
    out_f32 = jax.block_until_ready(
        fwd(x, weight, bias, compute_dtype=jnp.float32))
    ref = jnp.mean(x, axis=1) @ weight.T + bias
    assert out_f32.shape == (B, 3)
    assert jnp.allclose(out_f32, ref, atol=1e-4, rtol=1e-4)

    # Case 2: default bf16 compute path (halved DMA), small batch.
    out_bf16 = jax.block_until_ready(fwd(x, weight, bias))
    assert out_bf16.shape == (B, 3)
    assert jnp.allclose(out_bf16, ref, atol=3e-2, rtol=3e-2)

    # Case 3: exercise the ragged / unpadded grid path (B % tb != 0).
    B2 = 10
    x_big = jax.random.normal(k_x2, (B2, T, D), dtype=jnp.float32)
    out2 = jax.block_until_ready(fwd(x_big, weight, bias, block_b=8))
    ref2 = jnp.mean(x_big, axis=1) @ weight.T + bias
    assert out2.shape == (B2, 3)
    assert jnp.allclose(out2, ref2, atol=3e-2, rtol=3e-2)

    print("KERNEL_OK")
</pallas_src>

<mosaic_0001>
module attributes {stable_mosaic.version = 11 : i64} {
  func.func @_w2v_to_pixel_kernel(%arg0: i32, %arg1: memref<2x2400xf32, #tpu.memory_space<vmem>>, %arg2: memref<2400x3xf32, #tpu.memory_space<vmem>>, %arg3: memref<1x3xf32, #tpu.memory_space<vmem>>, %arg4: memref<2x3xf32, #tpu.memory_space<vmem>>) attributes {dimension_semantics = [#tpu.dimension_semantics<parallel>], iteration_bounds = array<i64: 1>, scalar_prefetch = 0 : i64, scratch_operands = 0 : i64, tpu.core_type = #tpu.core_type<tc>, window_params = [{transform_indices = @transform_0, window_bounds = array<i64: 2, 2400>}, {pipeline_mode = #tpu.pipeline_mode<synchronous>, transform_indices = @transform_1, window_bounds = array<i64: 2400, 3>}, {pipeline_mode = #tpu.pipeline_mode<synchronous>, transform_indices = @transform_2, window_bounds = array<i64: 1, 3>}, {transform_indices = @transform_3, window_bounds = array<i64: 2, 3>}]} {
    %c0 = arith.constant 0 : index
    %c0_0 = arith.constant 0 : index
    %0 = vector.load %arg1[%c0, %c0_0] : memref<2x2400xf32, #tpu.memory_space<vmem>>, vector<2x2400xf32>
    %c0_1 = arith.constant 0 : index
    %c0_2 = arith.constant 0 : index
    %1 = vector.load %arg2[%c0_1, %c0_2] : memref<2400x3xf32, #tpu.memory_space<vmem>>, vector<2400x3xf32>
    %cst = arith.constant dense<0.000000e+00> : vector<2x3xf32>
    %2 = tpu.matmul %0, %1, %cst {dimension_numbers = #tpu.dot_dimension_numbers<[1], [0], [0], [1], [0, 0, 1, 1], [], []>} : vector<2x2400xf32>, vector<2400x3xf32>, vector<2x3xf32> -> vector<2x3xf32>
    %c0_3 = arith.constant 0 : index
    %c0_4 = arith.constant 0 : index
    %3 = vector.load %arg3[%c0_3, %c0_4] : memref<1x3xf32, #tpu.memory_space<vmem>>, vector<1x3xf32>
    %4 = vector.broadcast %3 : vector<1x3xf32> to vector<2x3xf32>
    %5 = arith.addf %2, %4 : vector<2x3xf32>
    %c0_5 = arith.constant 0 : index
    %c0_6 = arith.constant 0 : index
    %6 = vector.load %arg4[%c0_5, %c0_6] : memref<2x3xf32, #tpu.memory_space<vmem>>, vector<2x3xf32>
    tpu.vector_store %arg4[%c0_5, %c0_6], %5 {strides = array<i32>} : memref<2x3xf32, #tpu.memory_space<vmem>>, vector<2x3xf32>,
    return
  }
  func.func @transform_0(%arg0: i32) -> (i32, i32) {
    %c0_i32 = arith.constant 0 : i32
    %c0_i32_0 = arith.constant 0 : i32
    return %arg0, %c0_i32 : i32, i32
  }
  func.func @transform_1(%arg0: i32) -> (i32, i32) {
    %c0_i32 = arith.constant 0 : i32
    %c0_i32_0 = arith.constant 0 : i32
    %c0_i32_1 = arith.constant 0 : i32
    return %c0_i32, %c0_i32_0 : i32, i32
  }
  func.func @transform_2(%arg0: i32) -> (i32, i32) {
    %c0_i32 = arith.constant 0 : i32
    %c0_i32_0 = arith.constant 0 : i32
    %c0_i32_1 = arith.constant 0 : i32
    return %c0_i32, %c0_i32_0 : i32, i32
  }
  func.func @transform_3(%arg0: i32) -> (i32, i32) {
    %c0_i32 = arith.constant 0 : i32
    %c0_i32_0 = arith.constant 0 : i32
    return %arg0, %c0_i32 : i32, i32
  }
}

</mosaic_0001>

<llo_original>
// kernel: word2vec_to_pixel.1
$region0: #{word2vec_to_pixel.1}
  #allocation0 [shape = 'u32[]', space=smem, size = 0x4, offset = 0x4, fixed_abs, tag = 'smem constant byte address 0x4 - core index']
  #allocation1 [shape = 'u32[144,128]{1,0:T(1,128)}', space=vmem, size = 0x12000, scoped, tag = 'internal scratch']
  %s0 = inlined_call_operand.vmem [shape: f32[2,2400], index: 0, kind: input, shape index: {}]
  %s1 = inlined_call_operand.vmem [shape: f32[2400,3], index: 1, kind: input, shape index: {}]
  %s2 = inlined_call_operand.vmem [shape: f32[1,3], index: 2, kind: input, shape index: {}]
  %s3 = inlined_call_operand.hbm [shape: f32[2,3], index: 3, kind: output, shape index: {}]
  %s4 = sld [smem:[#allocation0]]
  $region22: #{word2vec_to_pixel.1} parent=0
    _
  %s6 = ssub.s32 1, %s4
  %s7 = scalar_select 0, %s6, %s4
  $region1: #{word2vec_to_pixel.1} parent=0
    #allocation2 [shape = 'u8[1024]{0}', space=vmem, size = 0x400, scoped, tag = 'output window, operand 0, single buffered']
    #allocation3 [shape = 's32[1]{0}', space=sflag, size = 0x4, scoped, tag = 'scoped memory for word2vec_to_pixel.1']
    %8 = vsyncpa [#allocation3], 0
    // Predicated region
    $region2: #{word2vec_to_pixel.1} parent=1 // pred_check
      _
    $region3: #{word2vec_to_pixel.1} parent=1 // pred_check_branch
      %10 = sbr.rel (0) target = $region5
    $region4: #{word2vec_to_pixel.1} parent=1 // pred_region
      _
    $region5: #{word2vec_to_pixel.1} parent=1 // pred_fallthru
      _
    // Predicated region
    $region6: #{word2vec_to_pixel.1} parent=1 // pred_check
      _
    $region7: #{word2vec_to_pixel.1} parent=1 // pred_check_branch
      %12 = sbr.rel (0) target = $region9
    $region8: #{word2vec_to_pixel.1} parent=1 // pred_region
      _
    $region9: #{word2vec_to_pixel.1} parent=1 // pred_fallthru
      _
    // Predicated region
    $region10: #{word2vec_to_pixel.1} parent=1 // pred_check
      _
    $region11: #{word2vec_to_pixel.1} parent=1 // pred_check_branch
      %14 = sbr.rel (0) target = $region13
    $region12: #{word2vec_to_pixel.1} parent=1 // pred_region
      _
    $region13: #{word2vec_to_pixel.1} parent=1 // pred_fallthru
      _
    %v15 = vld [vmem:[%s0] sm:$0xff]
    %v16 = vld [vmem:[%s0 + $0x8] sm:$0xff]
    %v17 = vld [vmem:[%s0 + $0x10] sm:$0xff]
    %v18 = vld [vmem:[%s0 + $0x18] sm:$0xff]
    %v19 = vld [vmem:[%s0 + $0x20] sm:$0x3f]
    %v20 = vld [vmem:[%s1] sm:$0xff]
    %v21 = vld [vmem:[%s1 + $0x8] sm:$0xff]
    %v22 = vld [vmem:[%s1 + $0x10] sm:$0xff]
    %v23 = vld [vmem:[%s1 + $0x18] sm:$0xff]
    %v24 = vld [vmem:[%s1 + $0x20] sm:$0xff]
    %v25 = vld [vmem:[%s1 + $0x28] sm:$0xff]
    %v26 = vld [vmem:[%s1 + $0x30] sm:$0xff]
    %v27 = vld [vmem:[%s1 + $0x38] sm:$0xff]
    %v28 = vld [vmem:[%s1 + $0x40] sm:$0xff]
    %v29 = vld [vmem:[%s1 + $0x48] sm:$0xff]
    %v30 = vld [vmem:[%s1 + $0x50] sm:$0xff]
    %v31 = vld [vmem:[%s1 + $0x58] sm:$0xff]
    %v32 = vld [vmem:[%s1 + $0x60] sm:$0xff]
    %v33 = vld [vmem:[%s1 + $0x68] sm:$0xff]
    %v34 = vld [vmem:[%s1 + $0x70] sm:$0xff]
    %v35 = vld [vmem:[%s1 + $0x78] sm:$0xff]
    %v36 = vld [vmem:[%s1 + $0x80] sm:$0xff]
    %v37 = vld [vmem:[%s1 + $0x88] sm:$0xff]
    %v38 = vld [vmem:[%s1 + $0x90] sm:$0xff]
    %v39 = vld [vmem:[%s1 + $0x98] sm:$0xff]
    %v40 = vld [vmem:[%s1 + $0xa0] sm:$0xff]
    %v41 = vld [vmem:[%s1 + $0xa8] sm:$0xff]
    %v42 = vld [vmem:[%s1 + $0xb0] sm:$0xff]
    %v43 = vld [vmem:[%s1 + $0xb8] sm:$0xff]
    %v44 = vld [vmem:[%s1 + $0xc0] sm:$0xff]
    %v45 = vld [vmem:[%s1 + $0xc8] sm:$0xff]
    %v46 = vld [vmem:[%s1 + $0xd0] sm:$0xff]
    %v47 = vld [vmem:[%s1 + $0xd8] sm:$0xff]
    %v48 = vld [vmem:[%s1 + $0xe0] sm:$0xff]
    %v49 = vld [vmem:[%s1 + $0xe8] sm:$0xff]
    %v50 = vld [vmem:[%s1 + $0xf0] sm:$0xff]
    %v51 = vld [vmem:[%s1 + $0xf8] sm:$0xff]
    %v52 = vld [vmem:[%s1 + $0x100] sm:$0xff]
    %v53 = vld [vmem:[%s1 + $0x108] sm:$0xff]
    %v54 = vld [vmem:[%s1 + $0x110] sm:$0xff]
    %v55 = vld [vmem:[%s1 + $0x118] sm:$0xff]
    %v56 = vld [vmem:[%s1 + $0x120] sm:$0xff]
    %v57 = vld [vmem:[%s1 + $0x128] sm:$0xff]
    %v58 = vld [vmem:[%s1 + $0x130] sm:$0xff]
    %v59 = vld [vmem:[%s1 + $0x138] sm:$0xff]
    %v60 = vld [vmem:[%s1 + $0x140] sm:$0xff]
    %v61 = vld [vmem:[%s1 + $0x148] sm:$0xff]
    %v62 = vld [vmem:[%s1 + $0x150] sm:$0xff]
    %v63 = vld [vmem:[%s1 + $0x158] sm:$0xff]
    %v64 = vld [vmem:[%s1 + $0x160] sm:$0xff]
    %v65 = vld [vmem:[%s1 + $0x168] sm:$0xff]
    %v66 = vld [vmem:[%s1 + $0x170] sm:$0xff]
    %v67 = vld [vmem:[%s1 + $0x178] sm:$0xff]
    %v68 = vld [vmem:[%s1 + $0x180] sm:$0xff]
    %v69 = vld [vmem:[%s1 + $0x188] sm:$0xff]
    %v70 = vld [vmem:[%s1 + $0x190] sm:$0xff]
    %v71 = vld [vmem:[%s1 + $0x198] sm:$0xff]
    %v72 = vld [vmem:[%s1 + $0x1a0] sm:$0xff]
    %v73 = vld [vmem:[%s1 + $0x1a8] sm:$0xff]
    %v74 = vld [vmem:[%s1 + $0x1b0] sm:$0xff]
    %v75 = vld [vmem:[%s1 + $0x1b8] sm:$0xff]
    %v76 = vld [vmem:[%s1 + $0x1c0] sm:$0xff]
    %v77 = vld [vmem:[%s1 + $0x1c8] sm:$0xff]
    %v78 = vld [vmem:[%s1 + $0x1d0] sm:$0xff]
    %v79 = vld [vmem:[%s1 + $0x1d8] sm:$0xff]
    %v80 = vld [vmem:[%s1 + $0x1e0] sm:$0xff]
    %v81 = vld [vmem:[%s1 + $0x1e8] sm:$0xff]
    %v82 = vld [vmem:[%s1 + $0x1f0] sm:$0xff]
    %v83 = vld [vmem:[%s1 + $0x1f8] sm:$0xff]
    %v84 = vld [vmem:[%s1 + $0x200] sm:$0xff]
    %v85 = vld [vmem:[%s1 + $0x208] sm:$0xff]
    %v86 = vld [vmem:[%s1 + $0x210] sm:$0xff]
    %v87 = vld [vmem:[%s1 + $0x218] sm:$0xff]
    %v88 = vld [vmem:[%s1 + $0x220] sm:$0xff]
    %v89 = vld [vmem:[%s1 + $0x228] sm:$0xff]
    %v90 = vld [vmem:[%s1 + $0x230] sm:$0xff]
    %v91 = vld [vmem:[%s1 + $0x238] sm:$0xff]
    %v92 = vld [vmem:[%s1 + $0x240] sm:$0xff]
    %v93 = vld [vmem:[%s1 + $0x248] sm:$0xff]
    %v94 = vld [vmem:[%s1 + $0x250] sm:$0xff]
    %v95 = vld [vmem:[%s1 + $0x258] sm:$0xff]
    %v96 = vld [vmem:[%s1 + $0x260] sm:$0xff]
    %v97 = vld [vmem:[%s1 + $0x268] sm:$0xff]
    %v98 = vld [vmem:[%s1 + $0x270] sm:$0xff]
    %v99 = vld [vmem:[%s1 + $0x278] sm:$0xff]
    %v100 = vld [vmem:[%s1 + $0x280] sm:$0xff]
    %v101 = vld [vmem:[%s1 + $0x288] sm:$0xff]
    %v102 = vld [vmem:[%s1 + $0x290] sm:$0xff]
    %v103 = vld [vmem:[%s1 + $0x298] sm:$0xff]
    %v104 = vld [vmem:[%s1 + $0x2a0] sm:$0xff]
    %v105 = vld [vmem:[%s1 + $0x2a8] sm:$0xff]
    %v106 = vld [vmem:[%s1 + $0x2b0] sm:$0xff]
    %v107 = vld [vmem:[%s1 + $0x2b8] sm:$0xff]
    %v108 = vld [vmem:[%s1 + $0x2c0] sm:$0xff]
    %v109 = vld [vmem:[%s1 + $0x2c8] sm:$0xff]
    %v110 = vld [vmem:[%s1 + $0x2d0] sm:$0xff]
    %v111 = vld [vmem:[%s1 + $0x2d8] sm:$0xff]
    %v112 = vld [vmem:[%s1 + $0x2e0] sm:$0xff]
    %v113 = vld [vmem:[%s1 + $0x2e8] sm:$0xff]
    %v114 = vld [vmem:[%s1 + $0x2f0] sm:$0xff]
    %v115 = vld [vmem:[%s1 + $0x2f8] sm:$0xff]
    %v116 = vld [vmem:[%s1 + $0x300] sm:$0xff]
    %v117 = vld [vmem:[%s1 + $0x308] sm:$0xff]
    %v118 = vld [vmem:[%s1 + $0x310] sm:$0xff]
    %v119 = vld [vmem:[%s1 + $0x318] sm:$0xff]
    %v120 = vld [vmem:[%s1 + $0x320] sm:$0xff]
    %v121 = vld [vmem:[%s1 + $0x328] sm:$0xff]
    %v122 = vld [vmem:[%s1 + $0x330] sm:$0xff]
    %v123 = vld [vmem:[%s1 + $0x338] sm:$0xff]
    %v124 = vld [vmem:[%s1 + $0x340] sm:$0xff]
    %v125 = vld [vmem:[%s1 + $0x348] sm:$0xff]
    %v126 = vld [vmem:[%s1 + $0x350] sm:$0xff]
    %v127 = vld [vmem:[%s1 + $0x358] sm:$0xff]
    %v128 = vld [vmem:[%s1 + $0x360] sm:$0xff]
    %v129 = vld [vmem:[%s1 + $0x368] sm:$0xff]
    %v130 = vld [vmem:[%s1 + $0x370] sm:$0xff]
    %v131 = vld [vmem:[%s1 + $0x378] sm:$0xff]
    %v132 = vld [vmem:[%s1 + $0x380] sm:$0xff]
    %v133 = vld [vmem:[%s1 + $0x388] sm:$0xff]
    %v134 = vld [vmem:[%s1 + $0x390] sm:$0xff]
    %v135 = vld [vmem:[%s1 + $0x398] sm:$0xff]
    %v136 = vld [vmem:[%s1 + $0x3a0] sm:$0xff]
    %v137 = vld [vmem:[%s1 + $0x3a8] sm:$0xff]
    %v138 = vld [vmem:[%s1 + $0x3b0] sm:$0xff]
    %v139 = vld [vmem:[%s1 + $0x3b8] sm:$0xff]
    %v140 = vld [vmem:[%s1 + $0x3c0] sm:$0xff]
    %v141 = vld [vmem:[%s1 + $0x3c8] sm:$0xff]
    %v142 = vld [vmem:[%s1 + $0x3d0] sm:$0xff]
    %v143 = vld [vmem:[%s1 + $0x3d8] sm:$0xff]
    %v144 = vld [vmem:[%s1 + $0x3e0] sm:$0xff]
    %v145 = vld [vmem:[%s1 + $0x3e8] sm:$0xff]
    %v146 = vld [vmem:[%s1 + $0x3f0] sm:$0xff]
    %v147 = vld [vmem:[%s1 + $0x3f8] sm:$0xff]
    %v148 = vld [vmem:[%s1 + $0x400] sm:$0xff]
    %v149 = vld [vmem:[%s1 + $0x408] sm:$0xff]
    %v150 = vld [vmem:[%s1 + $0x410] sm:$0xff]
    %v151 = vld [vmem:[%s1 + $0x418] sm:$0xff]
    %v152 = vld [vmem:[%s1 + $0x420] sm:$0xff]
    %v153 = vld [vmem:[%s1 + $0x428] sm:$0xff]
    %v154 = vld [vmem:[%s1 + $0x430] sm:$0xff]
    %v155 = vld [vmem:[%s1 + $0x438] sm:$0xff]
    %v156 = vld [vmem:[%s1 + $0x440] sm:$0xff]
    %v157 = vld [vmem:[%s1 + $0x448] sm:$0xff]
    %v158 = vld [vmem:[%s1 + $0x450] sm:$0xff]
    %v159 = vld [vmem:[%s1 + $0x458] sm:$0xff]
    %v160 = vld [vmem:[%s1 + $0x460] sm:$0xff]
    %v161 = vld [vmem:[%s1 + $0x468] sm:$0xff]
    %v162 = vld [vmem:[%s1 + $0x470] sm:$0xff]
    %v163 = vld [vmem:[%s1 + $0x478] sm:$0xff]
    %v164 = vld [vmem:[%s1 + $0x480] sm:$0xff]
    %v165 = vld [vmem:[%s1 + $0x488] sm:$0xff]
    %v166 = vld [vmem:[%s1 + $0x490] sm:$0xff]
    %v167 = vld [vmem:[%s1 + $0x498] sm:$0xff]
    %v168 = vld [vmem:[%s1 + $0x4a0] sm:$0xff]
    %v169 = vld [vmem:[%s1 + $0x4a8] sm:$0xff]
    %v170 = vld [vmem:[%s1 + $0x4b0] sm:$0xff]
    %v171 = vld [vmem:[%s1 + $0x4b8] sm:$0xff]
    %v172 = vld [vmem:[%s1 + $0x4c0] sm:$0xff]
    %v173 = vld [vmem:[%s1 + $0x4c8] sm:$0xff]
    %v174 = vld [vmem:[%s1 + $0x4d0] sm:$0xff]
    %v175 = vld [vmem:[%s1 + $0x4d8] sm:$0xff]
    %v176 = vld [vmem:[%s1 + $0x4e0] sm:$0xff]
    %v177 = vld [vmem:[%s1 + $0x4e8] sm:$0xff]
    %v178 = vld [vmem:[%s1 + $0x4f0] sm:$0xff]
    %v179 = vld [vmem:[%s1 + $0x4f8] sm:$0xff]
    %v180 = vld [vmem:[%s1 + $0x500] sm:$0xff]
    %v181 = vld [vmem:[%s1 + $0x508] sm:$0xff]
    %v182 = vld [vmem:[%s1 + $0x510] sm:$0xff]
    %v183 = vld [vmem:[%s1 + $0x518] sm:$0xff]
    %v184 = vld [vmem:[%s1 + $0x520] sm:$0xff]
    %v185 = vld [vmem:[%s1 + $0x528] sm:$0xff]
    %v186 = vld [vmem:[%s1 + $0x530] sm:$0xff]
    %v187 = vld [vmem:[%s1 + $0x538] sm:$0xff]
    %v188 = vld [vmem:[%s1 + $0x540] sm:$0xff]
    %v189 = vld [vmem:[%s1 + $0x548] sm:$0xff]
    %v190 = vld [vmem:[%s1 + $0x550] sm:$0xff]
    %v191 = vld [vmem:[%s1 + $0x558] sm:$0xff]
    %v192 = vld [vmem:[%s1 + $0x560] sm:$0xff]
    %v193 = vld [vmem:[%s1 + $0x568] sm:$0xff]
    %v194 = vld [vmem:[%s1 + $0x570] sm:$0xff]
    %v195 = vld [vmem:[%s1 + $0x578] sm:$0xff]
    %v196 = vld [vmem:[%s1 + $0x580] sm:$0xff]
    %v197 = vld [vmem:[%s1 + $0x588] sm:$0xff]
    %v198 = vld [vmem:[%s1 + $0x590] sm:$0xff]
    %v199 = vld [vmem:[%s1 + $0x598] sm:$0xff]
    %v200 = vld [vmem:[%s1 + $0x5a0] sm:$0xff]
    %v201 = vld [vmem:[%s1 + $0x5a8] sm:$0xff]
    %v202 = vld [vmem:[%s1 + $0x5b0] sm:$0xff]
    %v203 = vld [vmem:[%s1 + $0x5b8] sm:$0xff]
    %v204 = vld [vmem:[%s1 + $0x5c0] sm:$0xff]
    %v205 = vld [vmem:[%s1 + $0x5c8] sm:$0xff]
    %v206 = vld [vmem:[%s1 + $0x5d0] sm:$0xff]
    %v207 = vld [vmem:[%s1 + $0x5d8] sm:$0xff]
    %v208 = vld [vmem:[%s1 + $0x5e0] sm:$0xff]
    %v209 = vld [vmem:[%s1 + $0x5e8] sm:$0xff]
    %v210 = vld [vmem:[%s1 + $0x5f0] sm:$0xff]
    %v211 = vld [vmem:[%s1 + $0x5f8] sm:$0xff]
    %v212 = vld [vmem:[%s1 + $0x600] sm:$0xff]
    %v213 = vld [vmem:[%s1 + $0x608] sm:$0xff]
    %v214 = vld [vmem:[%s1 + $0x610] sm:$0xff]
    %v215 = vld [vmem:[%s1 + $0x618] sm:$0xff]
    %v216 = vld [vmem:[%s1 + $0x620] sm:$0xff]
    %v217 = vld [vmem:[%s1 + $0x628] sm:$0xff]
    %v218 = vld [vmem:[%s1 + $0x630] sm:$0xff]
    %v219 = vld [vmem:[%s1 + $0x638] sm:$0xff]
    %v220 = vld [vmem:[%s1 + $0x640] sm:$0xff]
    %v221 = vld [vmem:[%s1 + $0x648] sm:$0xff]
    %v222 = vld [vmem:[%s1 + $0x650] sm:$0xff]
    %v223 = vld [vmem:[%s1 + $0x658] sm:$0xff]
    %v224 = vld [vmem:[%s1 + $0x660] sm:$0xff]
    %v225 = vld [vmem:[%s1 + $0x668] sm:$0xff]
    %v226 = vld [vmem:[%s1 + $0x670] sm:$0xff]
    %v227 = vld [vmem:[%s1 + $0x678] sm:$0xff]
    %v228 = vld [vmem:[%s1 + $0x680] sm:$0xff]
    %v229 = vld [vmem:[%s1 + $0x688] sm:$0xff]
    %v230 = vld [vmem:[%s1 + $0x690] sm:$0xff]
    %v231 = vld [vmem:[%s1 + $0x698] sm:$0xff]
    %v232 = vld [vmem:[%s1 + $0x6a0] sm:$0xff]
    %v233 = vld [vmem:[%s1 + $0x6a8] sm:$0xff]
    %v234 = vld [vmem:[%s1 + $0x6b0] sm:$0xff]
    %v235 = vld [vmem:[%s1 + $0x6b8] sm:$0xff]
    %v236 = vld [vmem:[%s1 + $0x6c0] sm:$0xff]
    %v237 = vld [vmem:[%s1 + $0x6c8] sm:$0xff]
    %v238 = vld [vmem:[%s1 + $0x6d0] sm:$0xff]
    %v239 = vld [vmem:[%s1 + $0x6d8] sm:$0xff]
    %v240 = vld [vmem:[%s1 + $0x6e0] sm:$0xff]
    %v241 = vld [vmem:[%s1 + $0x6e8] sm:$0xff]
    %v242 = vld [vmem:[%s1 + $0x6f0] sm:$0xff]
    %v243 = vld [vmem:[%s1 + $0x6f8] sm:$0xff]
    %v244 = vld [vmem:[%s1 + $0x700] sm:$0xff]
    %v245 = vld [vmem:[%s1 + $0x708] sm:$0xff]
    %v246 = vld [vmem:[%s1 + $0x710] sm:$0xff]
    %v247 = vld [vmem:[%s1 + $0x718] sm:$0xff]
    %v248 = vld [vmem:[%s1 + $0x720] sm:$0xff]
    %v249 = vld [vmem:[%s1 + $0x728] sm:$0xff]
    %v250 = vld [vmem:[%s1 + $0x730] sm:$0xff]
    %v251 = vld [vmem:[%s1 + $0x738] sm:$0xff]
    %v252 = vld [vmem:[%s1 + $0x740] sm:$0xff]
    %v253 = vld [vmem:[%s1 + $0x748] sm:$0xff]
    %v254 = vld [vmem:[%s1 + $0x750] sm:$0xff]
    %v255 = vld [vmem:[%s1 + $0x758] sm:$0xff]
    %v256 = vld [vmem:[%s1 + $0x760] sm:$0xff]
    %v257 = vld [vmem:[%s1 + $0x768] sm:$0xff]
    %v258 = vld [vmem:[%s1 + $0x770] sm:$0xff]
    %v259 = vld [vmem:[%s1 + $0x778] sm:$0xff]
    %v260 = vld [vmem:[%s1 + $0x780] sm:$0xff]
    %v261 = vld [vmem:[%s1 + $0x788] sm:$0xff]
    %v262 = vld [vmem:[%s1 + $0x790] sm:$0xff]
    %v263 = vld [vmem:[%s1 + $0x798] sm:$0xff]
    %v264 = vld [vmem:[%s1 + $0x7a0] sm:$0xff]
    %v265 = vld [vmem:[%s1 + $0x7a8] sm:$0xff]
    %v266 = vld [vmem:[%s1 + $0x7b0] sm:$0xff]
    %v267 = vld [vmem:[%s1 + $0x7b8] sm:$0xff]
    %v268 = vld [vmem:[%s1 + $0x7c0] sm:$0xff]
    %v269 = vld [vmem:[%s1 + $0x7c8] sm:$0xff]
    %v270 = vld [vmem:[%s1 + $0x7d0] sm:$0xff]
    %v271 = vld [vmem:[%s1 + $0x7d8] sm:$0xff]
    %v272 = vld [vmem:[%s1 + $0x7e0] sm:$0xff]
    %v273 = vld [vmem:[%s1 + $0x7e8] sm:$0xff]
    %v274 = vld [vmem:[%s1 + $0x7f0] sm:$0xff]
    %v275 = vld [vmem:[%s1 + $0x7f8] sm:$0xff]
    %v276 = vld [vmem:[%s1 + $0x800] sm:$0xff]
    %v277 = vld [vmem:[%s1 + $0x808] sm:$0xff]
    %v278 = vld [vmem:[%s1 + $0x810] sm:$0xff]
    %v279 = vld [vmem:[%s1 + $0x818] sm:$0xff]
    %v280 = vld [vmem:[%s1 + $0x820] sm:$0xff]
    %v281 = vld [vmem:[%s1 + $0x828] sm:$0xff]
    %v282 = vld [vmem:[%s1 + $0x830] sm:$0xff]
    %v283 = vld [vmem:[%s1 + $0x838] sm:$0xff]
    %v284 = vld [vmem:[%s1 + $0x840] sm:$0xff]
    %v285 = vld [vmem:[%s1 + $0x848] sm:$0xff]
    %v286 = vld [vmem:[%s1 + $0x850] sm:$0xff]
    %v287 = vld [vmem:[%s1 + $0x858] sm:$0xff]
    %v288 = vld [vmem:[%s1 + $0x860] sm:$0xff]
    %v289 = vld [vmem:[%s1 + $0x868] sm:$0xff]
    %v290 = vld [vmem:[%s1 + $0x870] sm:$0xff]
    %v291 = vld [vmem:[%s1 + $0x878] sm:$0xff]
    %v292 = vld [vmem:[%s1 + $0x880] sm:$0xff]
    %v293 = vld [vmem:[%s1 + $0x888] sm:$0xff]
    %v294 = vld [vmem:[%s1 + $0x890] sm:$0xff]
    %v295 = vld [vmem:[%s1 + $0x898] sm:$0xff]
    %v296 = vld [vmem:[%s1 + $0x8a0] sm:$0xff]
    %v297 = vld [vmem:[%s1 + $0x8a8] sm:$0xff]
    %v298 = vld [vmem:[%s1 + $0x8b0] sm:$0xff]
    %v299 = vld [vmem:[%s1 + $0x8b8] sm:$0xff]
    %v300 = vld [vmem:[%s1 + $0x8c0] sm:$0xff]
    %v301 = vld [vmem:[%s1 + $0x8c8] sm:$0xff]
    %v302 = vld [vmem:[%s1 + $0x8d0] sm:$0xff]
    %v303 = vld [vmem:[%s1 + $0x8d8] sm:$0xff]
    %v304 = vld [vmem:[%s1 + $0x8e0] sm:$0xff]
    %v305 = vld [vmem:[%s1 + $0x8e8] sm:$0xff]
    %v306 = vld [vmem:[%s1 + $0x8f0] sm:$0xff]
    %v307 = vld [vmem:[%s1 + $0x8f8] sm:$0xff]
    %v308 = vld [vmem:[%s1 + $0x900] sm:$0xff]
    %v309 = vld [vmem:[%s1 + $0x908] sm:$0xff]
    %v310 = vld [vmem:[%s1 + $0x910] sm:$0xff]
    %v311 = vld [vmem:[%s1 + $0x918] sm:$0xff]
    %v312 = vld [vmem:[%s1 + $0x920] sm:$0xff]
    %v313 = vld [vmem:[%s1 + $0x928] sm:$0xff]
    %v314 = vld [vmem:[%s1 + $0x930] sm:$0xff]
    %v315 = vld [vmem:[%s1 + $0x938] sm:$0xff]
    %v316 = vld [vmem:[%s1 + $0x940] sm:$0xff]
    %v317 = vld [vmem:[%s1 + $0x948] sm:$0xff]
    %v318 = vld [vmem:[%s1 + $0x950] sm:$0xff]
    %v319 = vld [vmem:[%s1 + $0x958] sm:$0xff]
    %v320 = vld [vmem:[%s2] sm:$0x1]
    %v322 = vlaneseq
    %v323 = vshrl.u32 %v322, 7
    %v324 = vsub.s32 0, %v323
    %v325 = vrot.slane %v320, %v324
    %v332 = vcombine.high %v15, %v15
    %v334 = vunpack.c.l.s4 1983009808
    %v335 = vunpack.c.0.s8 %v334
    %v336 = vlaneseq
    %v337 = vshrl.u32 %v336, 7
    %v338 = vsub.s32 %v335, %v337
    %v339 = vrot.slane %v15, %v338
    %v341 = vunpack.c.l.s4 1983009808
    %v342 = vunpack.c.0.s8 %v341
    %v343 = vlaneseq
    %v344 = vshrl.u32 %v343, 7
    %v345 = vsub.s32 %v342, %v344
    %v346 = vrot.slane %v332, %v345
    %v347 = vcombine.high %v339, %v339
    %v348 = vcombine.high %v346, %v346
    %v349 = vcombine.high %v16, %v16
    %v351 = vunpack.c.l.s4 1983009808
    %v352 = vunpack.c.0.s8 %v351
    %v353 = vlaneseq
    %v354 = vshrl.u32 %v353, 7
    %v355 = vsub.s32 %v352, %v354
    %v356 = vrot.slane %v16, %v355
    %v358 = vunpack.c.l.s4 1983009808
    %v359 = vunpack.c.0.s8 %v358
    %v360 = vlaneseq
    %v361 = vshrl.u32 %v360, 7
    %v362 = vsub.s32 %v359, %v361
    %v363 = vrot.slane %v349, %v362
    %v364 = vcombine.high %v356, %v356
    %v365 = vcombine.high %v363, %v363
    %v366 = vcombine.high %v17, %v17
    %v368 = vunpack.c.l.s4 1983009808
    %v369 = vunpack.c.0.s8 %v368
    %v370 = vlaneseq
    %v371 = vshrl.u32 %v370, 7
    %v372 = vsub.s32 %v369, %v371
    %v373 = vrot.slane %v17, %v372
    %v375 = vunpack.c.l.s4 1983009808
    %v376 = vunpack.c.0.s8 %v375
    %v377 = vlaneseq
    %v378 = vshrl.u32 %v377, 7
    %v379 = vsub.s32 %v376, %v378
    %v380 = vrot.slane %v366, %v379
    %v381 = vcombine.high %v373, %v373
    %v382 = vcombine.high %v380, %v380
    %v383 = vcombine.high %v18, %v18
    %v385 = vunpack.c.l.s4 1983009808
    %v386 = vunpack.c.0.s8 %v385
    %v387 = vlaneseq
    %v388 = vshrl.u32 %v387, 7
    %v389 = vsub.s32 %v386, %v388
    %v390 = vrot.slane %v18, %v389
    %v392 = vunpack.c.l.s4 1983009808
    %v393 = vunpack.c.0.s8 %v392
    %v394 = vlaneseq
    %v395 = vshrl.u32 %v394, 7
    %v396 = vsub.s32 %v393, %v395
    %v397 = vrot.slane %v383, %v396
    %v398 = vcombine.high %v390, %v390
    %v399 = vcombine.high %v397, %v397
    %v400 = vcombine.high %v19, %v19
    %v402 = vunpack.c.l.s4 1983009808
    %v403 = vunpack.c.0.s8 %v402
    %v404 = vlaneseq
    %v405 = vshrl.u32 %v404, 7
    %v406 = vsub.s32 %v403, %v405
    %v407 = vrot.slane %v19, %v406
    %v409 = vunpack.c.l.s4 1983009808
    %v410 = vunpack.c.0.s8 %v409
    %v411 = vlaneseq
    %v412 = vshrl.u32 %v411, 7
    %v413 = vsub.s32 %v410, %v412
    %v414 = vrot.slane %v400, %v413
    %v415 = vcombine.high %v407, %v407
    %vm434 = vcmask 785408
    %v435 = vsel %vm434, %v414, 0
    %437 = vmatprep.subr.mxu0 0.0
    %438 = vmatpush1.msra.mxu0 %v20
    %439 = vmatprep.subr.mxu0 0.0
    %440 = vmatpush1.msra.mxu0 %v21
    %441 = vmatprep.subr.mxu0 0.0
    %442 = vmatpush1.msra.mxu0 %v22
    %443 = vmatprep.subr.mxu0 0.0
    %444 = vmatpush1.msra.mxu0 %v23
    %445 = vmatprep.subr.mxu0 0.0
    %446 = vmatpush1.msra.mxu0 %v24
    %447 = vmatprep.subr.mxu0 0.0
    %448 = vmatpush1.msra.mxu0 %v25
    %449 = vmatprep.subr.mxu0 0.0
    %450 = vmatpush1.msra.mxu0 %v26
    %451 = vmatprep.subr.mxu0 0.0
    %452 = vmatpush1.msra.mxu0 %v27
    %453 = vmatprep.subr.mxu0 0.0
    %454 = vmatpush1.msra.mxu0 %v28
    %455 = vmatprep.subr.mxu0 0.0
    %456 = vmatpush1.msra.mxu0 %v29
    %457 = vmatprep.subr.mxu0 0.0
    %458 = vmatpush1.msra.mxu0 %v30
    %459 = vmatprep.subr.mxu0 0.0
    %460 = vmatpush1.msra.mxu0 %v31
    %461 = vmatprep.subr.mxu0 0.0
    %462 = vmatpush1.msra.mxu0 %v32
    %463 = vmatprep.subr.mxu0 0.0
    %464 = vmatpush1.msra.mxu0 %v33
    %465 = vmatprep.subr.mxu0 0.0
    %466 = vmatpush1.msra.mxu0 %v34
    %467 = vmatprep.subr.mxu0 0.0
    %468 = vmatpush1.msra.mxu0 %v35
    %469 = vmatprep.subr.mxu0 0.0
    %470 = vmatpush1.msra.mxu0 %v36
    %471 = vmatprep.subr.mxu0 0.0
    %472 = vmatpush1.msra.mxu0 %v37
    %473 = vmatprep.subr.mxu0 0.0
    %474 = vmatpush1.msra.mxu0 %v38
    %475 = vmatprep.subr.mxu0 0.0
    %476 = vmatpush1.msra.mxu0 %v39
    %477 = vmatprep.subr.mxu0 0.0
    %478 = vmatpush1.msra.mxu0 %v40
    %479 = vmatprep.subr.mxu0 0.0
    %480 = vmatpush1.msra.mxu0 %v41
    %481 = vmatprep.subr.mxu0 0.0
    %482 = vmatpush1.msra.mxu0 %v42
    %483 = vmatprep.subr.mxu0 0.0
    %484 = vmatpush1.msra.mxu0 %v43
    %485 = vmatprep.subr.mxu0 0.0
    %486 = vmatpush1.msra.mxu0 %v44
    %487 = vmatprep.subr.mxu0 0.0
    %488 = vmatpush1.msra.mxu0 %v45
    %489 = vmatprep.subr.mxu0 0.0
    %490 = vmatpush1.msra.mxu0 %v46
    %491 = vmatprep.subr.mxu0 0.0
    %492 = vmatpush1.msra.mxu0 %v47
    %493 = vmatprep.subr.mxu0 0.0
    %494 = vmatpush1.msra.mxu0 %v48
    %495 = vmatprep.subr.mxu0 0.0
    %496 = vmatpush1.msra.mxu0 %v49
    %497 = vmatprep.subr.mxu0 0.0
    %498 = vmatpush1.msra.mxu0 %v50
    %499 = vmatprep.subr.mxu0 0.0
    %500 = vmatpush1.msra.mxu0 %v51
    %501 = vmatprep.mubr.f32.mxu0 %v347
    %502 = vmatmul.mubr.f32.gmra.mrb[0].mxu0 %v339
    %v503 = vpop.f32.mrb[0].mxu0
    %v504 = vadd.f32 %v325, %v503
    %v505 = vpop.f32.mrb[0].mxu0
    %506 = vdwg.mxu0
    %507 = vmatprep.subr.mxu0 0.0
    %508 = vmatpush1.msra.mxu0 %v52
    %509 = vmatprep.subr.mxu0 0.0
    %510 = vmatpush1.msra.mxu0 %v53
    %511 = vmatprep.subr.mxu0 0.0
    %512 = vmatpush1.msra.mxu0 %v54
    %513 = vmatprep.subr.mxu0 0.0
    %514 = vmatpush1.msra.mxu0 %v55
    %515 = vmatprep.subr.mxu0 0.0
    %516 = vmatpush1.msra.mxu0 %v56
    %517 = vmatprep.subr.mxu0 0.0
    %518 = vmatpush1.msra.mxu0 %v57
    %519 = vmatprep.subr.mxu0 0.0
    %520 = vmatpush1.msra.mxu0 %v58
    %521 = vmatprep.subr.mxu0 0.0
    %522 = vmatpush1.msra.mxu0 %v59
    %523 = vmatprep.subr.mxu0 0.0
    %524 = vmatpush1.msra.mxu0 %v60
    %525 = vmatprep.subr.mxu0 0.0
    %526 = vmatpush1.msra.mxu0 %v61
    %527 = vmatprep.subr.mxu0 0.0
    %528 = vmatpush1.msra.mxu0 %v62
    %529 = vmatprep.subr.mxu0 0.0
    %530 = vmatpush1.msra.mxu0 %v63
    %531 = vmatprep.subr.mxu0 0.0
    %532 = vmatpush1.msra.mxu0 %v64
    %533 = vmatprep.subr.mxu0 0.0
    %534 = vmatpush1.msra.mxu0 %v65
    %535 = vmatprep.subr.mxu0 0.0
    %536 = vmatpush1.msra.mxu0 %v66
    %537 = vmatprep.subr.mxu0 0.0
    %538 = vmatpush1.msra.mxu0 %v67
    %539 = vmatprep.subr.mxu0 0.0
    %540 = vmatpush1.msra.mxu0 %v68
    %541 = vmatprep.subr.mxu0 0.0
    %542 = vmatpush1.msra.mxu0 %v69
    %543 = vmatprep.subr.mxu0 0.0
    %544 = vmatpush1.msra.mxu0 %v70
    %545 = vmatprep.subr.mxu0 0.0
    %546 = vmatpush1.msra.mxu0 %v71
    %547 = vmatprep.subr.mxu0 0.0
    %548 = vmatpush1.msra.mxu0 %v72
    %549 = vmatprep.subr.mxu0 0.0
    %550 = vmatpush1.msra.mxu0 %v73
    %551 = vmatprep.subr.mxu0 0.0
    %552 = vmatpush1.msra.mxu0 %v74
    %553 = vmatprep.subr.mxu0 0.0
    %554 = vmatpush1.msra.mxu0 %v75
    %555 = vmatprep.subr.mxu0 0.0
    %556 = vmatpush1.msra.mxu0 %v76
    %557 = vmatprep.subr.mxu0 0.0
    %558 = vmatpush1.msra.mxu0 %v77
    %559 = vmatprep.subr.mxu0 0.0
    %560 = vmatpush1.msra.mxu0 %v78
    %561 = vmatprep.subr.mxu0 0.0
    %562 = vmatpush1.msra.mxu0 %v79
    %563 = vmatprep.subr.mxu0 0.0
    %564 = vmatpush1.msra.mxu0 %v80
    %565 = vmatprep.subr.mxu0 0.0
    %566 = vmatpush1.msra.mxu0 %v81
    %567 = vmatprep.subr.mxu0 0.0
    %568 = vmatpush1.msra.mxu0 %v82
    %569 = vmatprep.subr.mxu0 0.0
    %570 = vmatpush1.msra.mxu0 %v83
    %571 = vmatprep.mubr.f32.mxu0 %v348
    %572 = vmatmul.mubr.f32.gmra.mrb[0].mxu0 %v346
    %v573 = vpop.f32.mrb[0].mxu0
    %v574 = vadd.f32 %v504, %v573
    %v575 = vpop.f32.mrb[0].mxu0
    %576 = vdwg.mxu0
    %577 = vmatprep.subr.mxu0 0.0
    %578 = vmatpush1.msra.mxu0 %v84
    %579 = vmatprep.subr.mxu0 0.0
    %580 = vmatpush1.msra.mxu0 %v85
    %581 = vmatprep.subr.mxu0 0.0
    %582 = vmatpush1.msra.mxu0 %v86
    %583 = vmatprep.subr.mxu0 0.0
    %584 = vmatpush1.msra.mxu0 %v87
    %585 = vmatprep.subr.mxu0 0.0
    %586 = vmatpush1.msra.mxu0 %v88
    %587 = vmatprep.subr.mxu0 0.0
    %588 = vmatpush1.msra.mxu0 %v89
    %589 = vmatprep.subr.mxu0 0.0
    %590 = vmatpush1.msra.mxu0 %v90
    %591 = vmatprep.subr.mxu0 0.0
    %592 = vmatpush1.msra.mxu0 %v91
    %593 = vmatprep.subr.mxu0 0.0
    %594 = vmatpush1.msra.mxu0 %v92
    %595 = vmatprep.subr.mxu0 0.0
    %596 = vmatpush1.msra.mxu0 %v93
    %597 = vmatprep.subr.mxu0 0.0
    %598 = vmatpush1.msra.mxu0 %v94
    %599 = vmatprep.subr.mxu0 0.0
    %600 = vmatpush1.msra.mxu0 %v95
    %601 = vmatprep.subr.mxu0 0.0
    %602 = vmatpush1.msra.mxu0 %v96
    %603 = vmatprep.subr.mxu0 0.0
    %604 = vmatpush1.msra.mxu0 %v97
    %605 = vmatprep.subr.mxu0 0.0
    %606 = vmatpush1.msra.mxu0 %v98
    %607 = vmatprep.subr.mxu0 0.0
    %608 = vmatpush1.msra.mxu0 %v99
    %609 = vmatprep.subr.mxu0 0.0
    %610 = vmatpush1.msra.mxu0 %v100
    %611 = vmatprep.subr.mxu0 0.0
    %612 = vmatpush1.msra.mxu0 %v101
    %613 = vmatprep.subr.mxu0 0.0
    %614 = vmatpush1.msra.mxu0 %v102
    %615 = vmatprep.subr.mxu0 0.0
    %616 = vmatpush1.msra.mxu0 %v103
    %617 = vmatprep.subr.mxu0 0.0
    %618 = vmatpush1.msra.mxu0 %v104
    %619 = vmatprep.subr.mxu0 0.0
    %620 = vmatpush1.msra.mxu0 %v105
    %621 = vmatprep.subr.mxu0 0.0
    %622 = vmatpush1.msra.mxu0 %v106
    %623 = vmatprep.subr.mxu0 0.0
    %624 = vmatpush1.msra.mxu0 %v107
    %625 = vmatprep.subr.mxu0 0.0
    %626 = vmatpush1.msra.mxu0 %v108
    %627 = vmatprep.subr.mxu0 0.0
    %628 = vmatpush1.msra.mxu0 %v109
    %629 = vmatprep.subr.mxu0 0.0
    %630 = vmatpush1.msra.mxu0 %v110
    %631 = vmatprep.subr.mxu0 0.0
    %632 = vmatpush1.msra.mxu0 %v111
    %633 = vmatprep.subr.mxu0 0.0
    %634 = vmatpush1.msra.mxu0 %v112
    %635 = vmatprep.subr.mxu0 0.0
    %636 = vmatpush1.msra.mxu0 %v113
    %637 = vmatprep.subr.mxu0 0.0
    %638 = vmatpush1.msra.mxu0 %v114
    %639 = vmatprep.subr.mxu0 0.0
    %640 = vmatpush1.msra.mxu0 %v115
    %641 = vmatprep.mubr.f32.mxu0 %v364
    %642 = vmatmul.mubr.f32.gmra.mrb[0].mxu0 %v356
    %v643 = vpop.f32.mrb[0].mxu0
    %v644 = vadd.f32 %v574, %v643
    %v645 = vpop.f32.mrb[0].mxu0
    %646 = vdwg.mxu0
    %647 = vmatprep.subr.mxu0 0.0
    %648 = vmatpush1.msra.mxu0 %v116
    %649 = vmatprep.subr.mxu0 0.0
    %650 = vmatpush1.msra.mxu0 %v117
    %651 = vmatprep.subr.mxu0 0.0
    %652 = vmatpush1.msra.mxu0 %v118
    %653 = vmatprep.subr.mxu0 0.0
    %654 = vmatpush1.msra.mxu0 %v119
    %655 = vmatprep.subr.mxu0 0.0
    %656 = vmatpush1.msra.mxu0 %v120
    %657 = vmatprep.subr.mxu0 0.0
    %658 = vmatpush1.msra.mxu0 %v121
    %659 = vmatprep.subr.mxu0 0.0
    %660 = vmatpush1.msra.mxu0 %v122
    %661 = vmatprep.subr.mxu0 0.0
    %662 = vmatpush1.msra.mxu0 %v123
    %663 = vmatprep.subr.mxu0 0.0
    %664 = vmatpush1.msra.mxu0 %v124
    %665 = vmatprep.subr.mxu0 0.0
    %666 = vmatpush1.msra.mxu0 %v125
    %667 = vmatprep.subr.mxu0 0.0
    %668 = vmatpush1.msra.mxu0 %v126
    %669 = vmatprep.subr.mxu0 0.0
    %670 = vmatpush1.msra.mxu0 %v127
    %671 = vmatprep.subr.mxu0 0.0
    %672 = vmatpush1.msra.mxu0 %v128
    %673 = vmatprep.subr.mxu0 0.0
    %674 = vmatpush1.msra.mxu0 %v129
    %675 = vmatprep.subr.mxu0 0.0
    %676 = vmatpush1.msra.mxu0 %v130
    %677 = vmatprep.subr.mxu0 0.0
    %678 = vmatpush1.msra.mxu0 %v131
    %679 = vmatprep.subr.mxu0 0.0
    %680 = vmatpush1.msra.mxu0 %v132
    %681 = vmatprep.subr.mxu0 0.0
    %682 = vmatpush1.msra.mxu0 %v133
    %683 = vmatprep.subr.mxu0 0.0
    %684 = vmatpush1.msra.mxu0 %v134
    %685 = vmatprep.subr.mxu0 0.0
    %686 = vmatpush1.msra.mxu0 %v135
    %687 = vmatprep.subr.mxu0 0.0
    %688 = vmatpush1.msra.mxu0 %v136
    %689 = vmatprep.subr.mxu0 0.0
    %690 = vmatpush1.msra.mxu0 %v137
    %691 = vmatprep.subr.mxu0 0.0
    %692 = vmatpush1.msra.mxu0 %v138
    %693 = vmatprep.subr.mxu0 0.0
    %694 = vmatpush1.msra.mxu0 %v139
    %695 = vmatprep.subr.mxu0 0.0
    %696 = vmatpush1.msra.mxu0 %v140
    %697 = vmatprep.subr.mxu0 0.0
    %698 = vmatpush1.msra.mxu0 %v141
    %699 = vmatprep.subr.mxu0 0.0
    %700 = vmatpush1.msra.mxu0 %v142
    %701 = vmatprep.subr.mxu0 0.0
    %702 = vmatpush1.msra.mxu0 %v143
    %703 = vmatprep.subr.mxu0 0.0
    %704 = vmatpush1.msra.mxu0 %v144
    %705 = vmatprep.subr.mxu0 0.0
    %706 = vmatpush1.msra.mxu0 %v145
    %707 = vmatprep.subr.mxu0 0.0
    %708 = vmatpush1.msra.mxu0 %v146
    %709 = vmatprep.subr.mxu0 0.0
    %710 = vmatpush1.msra.mxu0 %v147
    %711 = vmatprep.mubr.f32.mxu0 %v365
    %712 = vmatmul.mubr.f32.gmra.mrb[0].mxu0 %v363
    %v713 = vpop.f32.mrb[0].mxu0
    %v714 = vadd.f32 %v644, %v713
    %v715 = vpop.f32.mrb[0].mxu0
    %716 = vdwg.mxu0
    %717 = vmatprep.subr.mxu0 0.0
    %718 = vmatpush1.msra.mxu0 %v148
    %719 = vmatprep.subr.mxu0 0.0
    %720 = vmatpush1.msra.mxu0 %v149
    %721 = vmatprep.subr.mxu0 0.0
    %722 = vmatpush1.msra.mxu0 %v150
    %723 = vmatprep.subr.mxu0 0.0
    %724 = vmatpush1.msra.mxu0 %v151
    %725 = vmatprep.subr.mxu0 0.0
    %726 = vmatpush1.msra.mxu0 %v152
    %727 = vmatprep.subr.mxu0 0.0
    %728 = vmatpush1.msra.mxu0 %v153
    %729 = vmatprep.subr.mxu0 0.0
    %730 = vmatpush1.msra.mxu0 %v154
    %731 = vmatprep.subr.mxu0 0.0
    %732 = vmatpush1.msra.mxu0 %v155
    %733 = vmatprep.subr.mxu0 0.0
    %734 = vmatpush1.msra.mxu0 %v156
    %735 = vmatprep.subr.mxu0 0.0
    %736 = vmatpush1.msra.mxu0 %v157
    %737 = vmatprep.subr.mxu0 0.0
    %738 = vmatpush1.msra.mxu0 %v158
    %739 = vmatprep.subr.mxu0 0.0
    %740 = vmatpush1.msra.mxu0 %v159
    %741 = vmatprep.subr.mxu0 0.0
    %742 = vmatpush1.msra.mxu0 %v160
    %743 = vmatprep.subr.mxu0 0.0
    %744 = vmatpush1.msra.mxu0 %v161
    %745 = vmatprep.subr.mxu0 0.0
    %746 = vmatpush1.msra.mxu0 %v162
    %747 = vmatprep.subr.mxu0 0.0
    %748 = vmatpush1.msra.mxu0 %v163
    %749 = vmatprep.subr.mxu0 0.0
    %750 = vmatpush1.msra.mxu0 %v164
    %751 = vmatprep.subr.mxu0 0.0
    %752 = vmatpush1.msra.mxu0 %v165
    %753 = vmatprep.subr.mxu0 0.0
    %754 = vmatpush1.msra.mxu0 %v166
    %755 = vmatprep.subr.mxu0 0.0
    %756 = vmatpush1.msra.mxu0 %v167
    %757 = vmatprep.subr.mxu0 0.0
    %758 = vmatpush1.msra.mxu0 %v168
    %759 = vmatprep.subr.mxu0 0.0
    %760 = vmatpush1.msra.mxu0 %v169
    %761 = vmatprep.subr.mxu0 0.0
    %762 = vmatpush1.msra.mxu0 %v170
    %763 = vmatprep.subr.mxu0 0.0
    %764 = vmatpush1.msra.mxu0 %v171
    %765 = vmatprep.subr.mxu0 0.0
    %766 = vmatpush1.msra.mxu0 %v172
    %767 = vmatprep.subr.mxu0 0.0
    %768 = vmatpush1.msra.mxu0 %v173
    %769 = vmatprep.subr.mxu0 0.0
    %770 = vmatpush1.msra.mxu0 %v174
    %771 = vmatprep.subr.mxu0 0.0
    %772 = vmatpush1.msra.mxu0 %v175
    %773 = vmatprep.subr.mxu0 0.0
    %774 = vmatpush1.msra.mxu0 %v176
    %775 = vmatprep.subr.mxu0 0.0
    %776 = vmatpush1.msra.mxu0 %v177
    %777 = vmatprep.subr.mxu0 0.0
    %778 = vmatpush1.msra.mxu0 %v178
    %779 = vmatprep.subr.mxu0 0.0
    %780 = vmatpush1.msra.mxu0 %v179
    %781 = vmatprep.mubr.f32.mxu0 %v381
    %782 = vmatmul.mubr.f32.gmra.mrb[0].mxu0 %v373
    %v783 = vpop.f32.mrb[0].mxu0
    %v784 = vadd.f32 %v714, %v783
    %v785 = vpop.f32.mrb[0].mxu0
    %786 = vdwg.mxu0
    %787 = vmatprep.subr.mxu0 0.0
    %788 = vmatpush1.msra.mxu0 %v180
    %789 = vmatprep.subr.mxu0 0.0
    %790 = vmatpush1.msra.mxu0 %v181
    %791 = vmatprep.subr.mxu0 0.0
    %792 = vmatpush1.msra.mxu0 %v182
    %793 = vmatprep.subr.mxu0 0.0
    %794 = vmatpush1.msra.mxu0 %v183
    %795 = vmatprep.subr.mxu0 0.0
    %796 = vmatpush1.msra.mxu0 %v184
    %797 = vmatprep.subr.mxu0 0.0
    %798 = vmatpush1.msra.mxu0 %v185
    %799 = vmatprep.subr.mxu0 0.0
    %800 = vmatpush1.msra.mxu0 %v186
    %801 = vmatprep.subr.mxu0 0.0
    %802 = vmatpush1.msra.mxu0 %v187
    %803 = vmatprep.subr.mxu0 0.0
    %804 = vmatpush1.msra.mxu0 %v188
    %805 = vmatprep.subr.mxu0 0.0
    %806 = vmatpush1.msra.mxu0 %v189
    %807 = vmatprep.subr.mxu0 0.0
    %808 = vmatpush1.msra.mxu0 %v190
    %809 = vmatprep.subr.mxu0 0.0
    %810 = vmatpush1.msra.mxu0 %v191
    %811 = vmatprep.subr.mxu0 0.0
    %812 = vmatpush1.msra.mxu0 %v192
    %813 = vmatprep.subr.mxu0 0.0
    %814 = vmatpush1.msra.mxu0 %v193
    %815 = vmatprep.subr.mxu0 0.0
    %816 = vmatpush1.msra.mxu0 %v194
    %817 = vmatprep.subr.mxu0 0.0
    %818 = vmatpush1.msra.mxu0 %v195
    %819 = vmatprep.subr.mxu0 0.0
    %820 = vmatpush1.msra.mxu0 %v196
    %821 = vmatprep.subr.mxu0 0.0
    %822 = vmatpush1.msra.mxu0 %v197
    %823 = vmatprep.subr.mxu0 0.0
    %824 = vmatpush1.msra.mxu0 %v198
    %825 = vmatprep.subr.mxu0 0.0
    %826 = vmatpush1.msra.mxu0 %v199
    %827 = vmatprep.subr.mxu0 0.0
    %828 = vmatpush1.msra.mxu0 %v200
    %829 = vmatprep.subr.mxu0 0.0
    %830 = vmatpush1.msra.mxu0 %v201
    %831 = vmatprep.subr.mxu0 0.0
    %832 = vmatpush1.msra.mxu0 %v202
    %833 = vmatprep.subr.mxu0 0.0
    %834 = vmatpush1.msra.mxu0 %v203
    %835 = vmatprep.subr.mxu0 0.0
    %836 = vmatpush1.msra.mxu0 %v204
    %837 = vmatprep.subr.mxu0 0.0
    %838 = vmatpush1.msra.mxu0 %v205
    %839 = vmatprep.subr.mxu0 0.0
    %840 = vmatpush1.msra.mxu0 %v206
    %841 = vmatprep.subr.mxu0 0.0
    %842 = vmatpush1.msra.mxu0 %v207
    %843 = vmatprep.subr.mxu0 0.0
    %844 = vmatpush1.msra.mxu0 %v208
    %845 = vmatprep.subr.mxu0 0.0
    %846 = vmatpush1.msra.mxu0 %v209
    %847 = vmatprep.subr.mxu0 0.0
    %848 = vmatpush1.msra.mxu0 %v210
    %849 = vmatprep.subr.mxu0 0.0
    %850 = vmatpush1.msra.mxu0 %v211
    %851 = vmatprep.mubr.f32.mxu0 %v382
    %852 = vmatmul.mubr.f32.gmra.mrb[0].mxu0 %v380
    %v853 = vpop.f32.mrb[0].mxu0
    %v854 = vadd.f32 %v784, %v853
    %v855 = vpop.f32.mrb[0].mxu0
    %856 = vdwg.mxu0
    %857 = vmatprep.subr.mxu0 0.0
    %858 = vmatpush1.msra.mxu0 %v212
    %859 = vmatprep.subr.mxu0 0.0
    %860 = vmatpush1.msra.mxu0 %v213
    %861 = vmatprep.subr.mxu0 0.0
    %862 = vmatpush1.msra.mxu0 %v214
    %863 = vmatprep.subr.mxu0 0.0
    %864 = vmatpush1.msra.mxu0 %v215
    %865 = vmatprep.subr.mxu0 0.0
    %866 = vmatpush1.msra.mxu0 %v216
    %867 = vmatprep.subr.mxu0 0.0
    %868 = vmatpush1.msra.mxu0 %v217
    %869 = vmatprep.subr.mxu0 0.0
    %870 = vmatpush1.msra.mxu0 %v218
    %871 = vmatprep.subr.mxu0 0.0
    %872 = vmatpush1.msra.mxu0 %v219
    %873 = vmatprep.subr.mxu0 0.0
    %874 = vmatpush1.msra.mxu0 %v220
    %875 = vmatprep.subr.mxu0 0.0
    %876 = vmatpush1.msra.mxu0 %v221
    %877 = vmatprep.subr.mxu0 0.0
    %878 = vmatpush1.msra.mxu0 %v222
    %879 = vmatprep.subr.mxu0 0.0
    %880 = vmatpush1.msra.mxu0 %v223
    %881 = vmatprep.subr.mxu0 0.0
    %882 = vmatpush1.msra.mxu0 %v224
    %883 = vmatprep.subr.mxu0 0.0
    %884 = vmatpush1.msra.mxu0 %v225
    %885 = vmatprep.subr.mxu0 0.0
    %886 = vmatpush1.msra.mxu0 %v226
    %887 = vmatprep.subr.mxu0 0.0
    %888 = vmatpush1.msra.mxu0 %v227
    %889 = vmatprep.subr.mxu0 0.0
    %890 = vmatpush1.msra.mxu0 %v228
    %891 = vmatprep.subr.mxu0 0.0
    %892 = vmatpush1.msra.mxu0 %v229
    %893 = vmatprep.subr.mxu0 0.0
    %894 = vmatpush1.msra.mxu0 %v230
    %895 = vmatprep.subr.mxu0 0.0
    %896 = vmatpush1.msra.mxu0 %v231
    %897 = vmatprep.subr.mxu0 0.0
    %898 = vmatpush1.msra.mxu0 %v232
    %899 = vmatprep.subr.mxu0 0.0
    %900 = vmatpush1.msra.mxu0 %v233
    %901 = vmatprep.subr.mxu0 0.0
    %902 = vmatpush1.msra.mxu0 %v234
    %903 = vmatprep.subr.mxu0 0.0
    %904 = vmatpush1.msra.mxu0 %v235
    %905 = vmatprep.subr.mxu0 0.0
    %906 = vmatpush1.msra.mxu0 %v236
    %907 = vmatprep.subr.mxu0 0.0
    %908 = vmatpush1.msra.mxu0 %v237
    %909 = vmatprep.subr.mxu0 0.0
    %910 = vmatpush1.msra.mxu0 %v238
    %911 = vmatprep.subr.mxu0 0.0
    %912 = vmatpush1.msra.mxu0 %v239
    %913 = vmatprep.subr.mxu0 0.0
    %914 = vmatpush1.msra.mxu0 %v240
    %915 = vmatprep.subr.mxu0 0.0
    %916 = vmatpush1.msra.mxu0 %v241
    %917 = vmatprep.subr.mxu0 0.0
    %918 = vmatpush1.msra.mxu0 %v242
    %919 = vmatprep.subr.mxu0 0.0
    %920 = vmatpush1.msra.mxu0 %v243
    %921 = vmatprep.mubr.f32.mxu0 %v398
    %922 = vmatmul.mubr.f32.gmra.mrb[0].mxu0 %v390
    %v923 = vpop.f32.mrb[0].mxu0
    %v924 = vadd.f32 %v854, %v923
    %v925 = vpop.f32.mrb[0].mxu0
    %926 = vdwg.mxu0
    %927 = vmatprep.subr.mxu0 0.0
    %928 = vmatpush1.msra.mxu0 %v244
    %929 = vmatprep.subr.mxu0 0.0
    %930 = vmatpush1.msra.mxu0 %v245
    %931 = vmatprep.subr.mxu0 0.0
    %932 = vmatpush1.msra.mxu0 %v246
    %933 = vmatprep.subr.mxu0 0.0
    %934 = vmatpush1.msra.mxu0 %v247
    %935 = vmatprep.subr.mxu0 0.0
    %936 = vmatpush1.msra.mxu0 %v248
    %937 = vmatprep.subr.mxu0 0.0
    %938 = vmatpush1.msra.mxu0 %v249
    %939 = vmatprep.subr.mxu0 0.0
    %940 = vmatpush1.msra.mxu0 %v250
    %941 = vmatprep.subr.mxu0 0.0
    %942 = vmatpush1.msra.mxu0 %v251
    %943 = vmatprep.subr.mxu0 0.0
    %944 = vmatpush1.msra.mxu0 %v252
    %945 = vmatprep.subr.mxu0 0.0
    %946 = vmatpush1.msra.mxu0 %v253
    %947 = vmatprep.subr.mxu0 0.0
    %948 = vmatpush1.msra.mxu0 %v254
    %949 = vmatprep.subr.mxu0 0.0
    %950 = vmatpush1.msra.mxu0 %v255
    %951 = vmatprep.subr.mxu0 0.0
    %952 = vmatpush1.msra.mxu0 %v256
    %953 = vmatprep.subr.mxu0 0.0
    %954 = vmatpush1.msra.mxu0 %v257
    %955 = vmatprep.subr.mxu0 0.0
    %956 = vmatpush1.msra.mxu0 %v258
    %957 = vmatprep.subr.mxu0 0.0
    %958 = vmatpush1.msra.mxu0 %v259
    %959 = vmatprep.subr.mxu0 0.0
    %960 = vmatpush1.msra.mxu0 %v260
    %961 = vmatprep.subr.mxu0 0.0
    %962 = vmatpush1.msra.mxu0 %v261
    %963 = vmatprep.subr.mxu0 0.0
    %964 = vmatpush1.msra.mxu0 %v262
    %965 = vmatprep.subr.mxu0 0.0
    %966 = vmatpush1.msra.mxu0 %v263
    %967 = vmatprep.subr.mxu0 0.0
    %968 = vmatpush1.msra.mxu0 %v264
    %969 = vmatprep.subr.mxu0 0.0
    %970 = vmatpush1.msra.mxu0 %v265
    %971 = vmatprep.subr.mxu0 0.0
    %972 = vmatpush1.msra.mxu0 %v266
    %973 = vmatprep.subr.mxu0 0.0
    %974 = vmatpush1.msra.mxu0 %v267
    %975 = vmatprep.subr.mxu0 0.0
    %976 = vmatpush1.msra.mxu0 %v268
    %977 = vmatprep.subr.mxu0 0.0
    %978 = vmatpush1.msra.mxu0 %v269
    %979 = vmatprep.subr.mxu0 0.0
    %980 = vmatpush1.msra.mxu0 %v270
    %981 = vmatprep.subr.mxu0 0.0
    %982 = vmatpush1.msra.mxu0 %v271
    %983 = vmatprep.subr.mxu0 0.0
    %984 = vmatpush1.msra.mxu0 %v272
    %985 = vmatprep.subr.mxu0 0.0
    %986 = vmatpush1.msra.mxu0 %v273
    %987 = vmatprep.subr.mxu0 0.0
    %988 = vmatpush1.msra.mxu0 %v274
    %989 = vmatprep.subr.mxu0 0.0
    %990 = vmatpush1.msra.mxu0 %v275
    %991 = vmatprep.mubr.f32.mxu0 %v399
    %992 = vmatmul.mubr.f32.gmra.mrb[0].mxu0 %v397
    %v993 = vpop.f32.mrb[0].mxu0
    %v994 = vadd.f32 %v924, %v993
    %v995 = vpop.f32.mrb[0].mxu0
    %996 = vdwg.mxu0
    %997 = vmatprep.subr.mxu0 0.0
    %998 = vmatpush1.msra.mxu0 %v276
    %999 = vmatprep.subr.mxu0 0.0
    %1000 = vmatpush1.msra.mxu0 %v277
    %1001 = vmatprep.subr.mxu0 0.0
    %1002 = vmatpush1.msra.mxu0 %v278
    %1003 = vmatprep.subr.mxu0 0.0
    %1004 = vmatpush1.msra.mxu0 %v279
    %1005 = vmatprep.subr.mxu0 0.0
    %1006 = vmatpush1.msra.mxu0 %v280
    %1007 = vmatprep.subr.mxu0 0.0
    %1008 = vmatpush1.msra.mxu0 %v281
    %1009 = vmatprep.subr.mxu0 0.0
    %1010 = vmatpush1.msra.mxu0 %v282
    %1011 = vmatprep.subr.mxu0 0.0
    %1012 = vmatpush1.msra.mxu0 %v283
    %1013 = vmatprep.subr.mxu0 0.0
    %1014 = vmatpush1.msra.mxu0 %v284
    %1015 = vmatprep.subr.mxu0 0.0
    %1016 = vmatpush1.msra.mxu0 %v285
    %1017 = vmatprep.subr.mxu0 0.0
    %1018 = vmatpush1.msra.mxu0 %v286
    %1019 = vmatprep.subr.mxu0 0.0
    %1020 = vmatpush1.msra.mxu0 %v287
    %1021 = vmatprep.subr.mxu0 0.0
    %1022 = vmatpush1.msra.mxu0 %v288
    %1023 = vmatprep.subr.mxu0 0.0
    %1024 = vmatpush1.msra.mxu0 %v289
    %1025 = vmatprep.subr.mxu0 0.0
    %1026 = vmatpush1.msra.mxu0 %v290
    %1027 = vmatprep.subr.mxu0 0.0
    %1028 = vmatpush1.msra.mxu0 %v291
    %1029 = vmatprep.subr.mxu0 0.0
    %1030 = vmatpush1.msra.mxu0 %v292
    %1031 = vmatprep.subr.mxu0 0.0
    %1032 = vmatpush1.msra.mxu0 %v293
    %1033 = vmatprep.subr.mxu0 0.0
    %1034 = vmatpush1.msra.mxu0 %v294
    %1035 = vmatprep.subr.mxu0 0.0
    %1036 = vmatpush1.msra.mxu0 %v295
    %1037 = vmatprep.subr.mxu0 0.0
    %1038 = vmatpush1.msra.mxu0 %v296
    %1039 = vmatprep.subr.mxu0 0.0
    %1040 = vmatpush1.msra.mxu0 %v297
    %1041 = vmatprep.subr.mxu0 0.0
    %1042 = vmatpush1.msra.mxu0 %v298
    %1043 = vmatprep.subr.mxu0 0.0
    %1044 = vmatpush1.msra.mxu0 %v299
    %1045 = vmatprep.subr.mxu0 0.0
    %1046 = vmatpush1.msra.mxu0 %v300
    %1047 = vmatprep.subr.mxu0 0.0
    %1048 = vmatpush1.msra.mxu0 %v301
    %1049 = vmatprep.subr.mxu0 0.0
    %1050 = vmatpush1.msra.mxu0 %v302
    %1051 = vmatprep.subr.mxu0 0.0
    %1052 = vmatpush1.msra.mxu0 %v303
    %1053 = vmatprep.subr.mxu0 0.0
    %1054 = vmatpush1.msra.mxu0 %v304
    %1055 = vmatprep.subr.mxu0 0.0
    %1056 = vmatpush1.msra.mxu0 %v305
    %1057 = vmatprep.subr.mxu0 0.0
    %1058 = vmatpush1.msra.mxu0 %v306
    %1059 = vmatprep.subr.mxu0 0.0
    %1060 = vmatpush1.msra.mxu0 %v307
    %1061 = vmatprep.mubr.f32.mxu0 %v415
    %1062 = vmatmul.mubr.f32.gmra.mrb[0].mxu0 %v407
    %v1063 = vpop.f32.mrb[0].mxu0
    %v1064 = vadd.f32 %v994, %v1063
    %v1065 = vpop.f32.mrb[0].mxu0
    %1066 = vdwg.mxu0
    %1067 = vmatprep.subr.mxu0 0.0
    %1068 = vmatpush1.msra.mxu0 %v308
    %1069 = vmatprep.subr.mxu0 0.0
    %1070 = vmatpush1.msra.mxu0 %v309
    %1071 = vmatprep.subr.mxu0 0.0
    %1072 = vmatpush1.msra.mxu0 %v310
    %1073 = vmatprep.subr.mxu0 0.0
    %1074 = vmatpush1.msra.mxu0 %v311
    %1075 = vmatprep.subr.mxu0 0.0
    %1076 = vmatpush1.msra.mxu0 %v312
    %1077 = vmatprep.subr.mxu0 0.0
    %1078 = vmatpush1.msra.mxu0 %v313
    %1079 = vmatprep.subr.mxu0 0.0
    %1080 = vmatpush1.msra.mxu0 %v314
    %1081 = vmatprep.subr.mxu0 0.0
    %1082 = vmatpush1.msra.mxu0 %v315
    %1083 = vmatprep.subr.mxu0 0.0
    %1084 = vmatpush1.msra.mxu0 %v316
    %1085 = vmatprep.subr.mxu0 0.0
    %1086 = vmatpush1.msra.mxu0 %v317
    %1087 = vmatprep.subr.mxu0 0.0
    %1088 = vmatpush1.msra.mxu0 %v318
    %1089 = vmatprep.subr.mxu0 0.0
    %1090 = vmatpush1.msra.mxu0 %v319
    %1091 = vmatprep.subr.mxu0 0.0
    %1092 = vmatpush1.msra.mxu0 0.0
    %1093 = vmatprep.subr.mxu0 0.0
    %1094 = vmatpush1.msra.mxu0 0.0
    %1095 = vmatprep.subr.mxu0 0.0
    %1096 = vmatpush1.msra.mxu0 0.0
    %1097 = vmatprep.subr.mxu0 0.0
    %1098 = vmatpush1.msra.mxu0 0.0
    %1099 = vmatprep.subr.mxu0 0.0
    %1100 = vmatpush1.msra.mxu0 0.0
    %1101 = vmatprep.subr.mxu0 0.0
    %1102 = vmatpush1.msra.mxu0 0.0
    %1103 = vmatprep.subr.mxu0 0.0
    %1104 = vmatpush1.msra.mxu0 0.0
    %1105 = vmatprep.subr.mxu0 0.0
    %1106 = vmatpush1.msra.mxu0 0.0
    %1107 = vmatprep.subr.mxu0 0.0
    %1108 = vmatpush1.msra.mxu0 0.0
    %1109 = vmatprep.subr.mxu0 0.0
    %1110 = vmatpush1.msra.mxu0 0.0
    %1111 = vmatprep.subr.mxu0 0.0
    %1112 = vmatpush1.msra.mxu0 0.0
    %1113 = vmatprep.subr.mxu0 0.0
    %1114 = vmatpush1.msra.mxu0 0.0
    %1115 = vmatprep.subr.mxu0 0.0
    %1116 = vmatpush1.msra.mxu0 0.0
    %1117 = vmatprep.subr.mxu0 0.0
    %1118 = vmatpush1.msra.mxu0 0.0
    %1119 = vmatprep.subr.mxu0 0.0
    %1120 = vmatpush1.msra.mxu0 0.0
    %1121 = vmatprep.subr.mxu0 0.0
    %1122 = vmatpush1.msra.mxu0 0.0
    %1123 = vmatprep.subr.mxu0 0.0
    %1124 = vmatpush1.msra.mxu0 0.0
    %1125 = vmatprep.subr.mxu0 0.0
    %1126 = vmatpush1.msra.mxu0 0.0
    %1127 = vmatprep.subr.mxu0 0.0
    %1128 = vmatpush1.msra.mxu0 0.0
    %1129 = vmatprep.subr.mxu0 0.0
    %1130 = vmatpush1.msra.mxu0 0.0
    %1131 = vmatprep.mubr.f32.mxu0 0.0
    %1132 = vmatmul.mubr.f32.gmra.mrb[0].mxu0 %v435
    %v1133 = vpop.f32.mrb[0].mxu0
    %v1134 = vadd.f32 %v1064, %v1133
    %v1135 = vpop.f32.mrb[0].mxu0
    %1136 = vdwg.mxu0
    %vm1137 = vcmask 17408
    %1138 = vst.msk [vmem:[#allocation2] sm:$0x3] %vm1137, %v1134
    // Predicated region
    $region14: #{word2vec_to_pixel.1} parent=1 // pred_check
      _
    $region15: #{word2vec_to_pixel.1} parent=1 // pred_check_branch
      %1140 = sbr.rel (0) target = $region17
    $region16: #{word2vec_to_pixel.1} parent=1 // pred_region
      %s1142 = ssub.s32 32, 32
      %1143 = vsyncadd [#allocation3], %s1142
      %s1145 = sshll.u32 [#allocation2], 4
      %s1146 = int_to_ptr.vmem [resolvable:$true] %s1145
      %1148 = dma.vmem_to_hbm [thread:$0]  %s1146, 32, %s3, [#allocation3]
    $region17: #{word2vec_to_pixel.1} parent=1 // pred_fallthru
      _
    // Predicated region
    $region18: #{word2vec_to_pixel.1} parent=1 // pred_check
      _
    $region19: #{word2vec_to_pixel.1} parent=1 // pred_check_branch
      %1150 = sbr.rel (0) target = $region21
    $region20: #{word2vec_to_pixel.1} parent=1 // pred_region
      %1151 = dma.done [#allocation3], 32
    $region21: #{word2vec_to_pixel.1} parent=1 // pred_fallthru
      _
    %1152 = vsyncpa [#allocation3], 1

</llo_original>
